<compile_context>
chip_gen: v7x
topology: tpu7x:2x2x1
jax: 0.10.0
libtpu: 0.0.40
codegen_flags: <defaults>
</compile_context>

<pallas_src>
import functools

import jax
import jax.numpy as jnp
from jax.experimental import pallas as pl
from jax.experimental.pallas import tpu as pltpu


LANE = 128
SUBLANE = 8


def _round_up(x, m):
    return ((x + m - 1) // m) * m


def _critic_kernel(layer_num, in_dim, activation,
                   x_ref, w_ref, wq_ref, b_ref, bq_ref, out_ref):
    """One batch tile of the critic MLP; Q written lane-dense (transposed).

    x_ref:   (TILE_B, in_dim) bf16       concat(state, action); padded batch rows are 0
    w_ref:   (layer_num, P, P) bf16      hidden weights; layer 0 uses only rows [:in_dim]
    wq_ref:  (8, P) bf16                 output weight as a row (row 0 real, rows 1..7 zero)
    b_ref:   (layer_num, 1, P) f32       hidden biases
    bq_ref:  (1,) f32 in SMEM            output bias (scalar)
    out_ref: (8, TILE_B) f32             Q for this tile in row 0 (rows 1..7 are padding)
    """
    # First hidden layer: contract only the real input lanes against the top
    # in_dim rows of W0 (K = in_dim, no work on zero-padded lanes).
    x = x_ref[...].astype(jnp.float32)                         # (tb, in_dim)
    w0 = w_ref[0, :in_dim, :].astype(jnp.float32)              # (in_dim, P)
    h = jnp.dot(x, w0, preferred_element_type=jnp.float32) + b_ref[0]
    h = jnp.maximum(h, 0.0)

    # Remaining hidden layers: Linear + ReLU, f32 activations, bf16->f32 weights.
    for l in range(1, layer_num):
        w = w_ref[l].astype(jnp.float32)                       # (P, P)
        h = jnp.dot(h, w, preferred_element_type=jnp.float32) + b_ref[l]
        h = jnp.maximum(h, 0.0)

    # Output layer, computed transposed so Q lands as a lane-dense (8, tb) block:
    #   q[r, b] = sum_k wq[r, k] * h[b, k]   (row 0 is the real Q; rows 1..7 are 0)
    q = jax.lax.dot_general(
        wq_ref[...].astype(jnp.float32), h,
        dimension_numbers=(((1,), (1,)), ((), ())),
        preferred_element_type=jnp.float32)                    # (8, tb)
    q = q + bq_ref[0]
    if activation == "sigmoid":
        q = jax.nn.sigmoid(q)
    elif activation == "tanh":
        q = jnp.tanh(q)
    out_ref[...] = q


def pack_params(params, state_dim, action_dim, activation="linear"):
    """Pack per-layer (W, b) into the kernel's resident parameter blocks (once, at init).

    params: list of (W, b); W stored as (in, out) (transpose of nn.Linear.weight),
            b as (out,).  params[0] is the first hidden layer (in == state_dim+action_dim),
            params[-1] is the 1-wide output layer.
    """
    assert len(params) >= 2, "need at least one hidden layer + output layer"
    layer_num = len(params) - 1
    in_dim = state_dim + action_dim
    assert params[0][0].shape[0] == in_dim

    hidden_out = [params[i][0].shape[1] for i in range(layer_num)]
    P = max(LANE, _round_up(max([in_dim] + hidden_out), LANE))

    def pad2(a, rows, cols):
        a = jnp.asarray(a, jnp.float32)
        return jnp.pad(a, ((0, rows - a.shape[0]), (0, cols - a.shape[1])))

    # Hidden-layer weight stack (layer 0 included, rows beyond in_dim never read).
    w_stack = jnp.stack(
        [pad2(params[i][0], P, P) for i in range(layer_num)]).astype(jnp.bfloat16)
    # Hidden biases.
    b_stack = jnp.stack(
        [pad2(params[i][1].reshape(1, -1), 1, P) for i in range(layer_num)])   # f32
    # Output layer as a lane-dense row (row 0 = W_out column, rows 1..7 zero).
    w_out, b_out = params[layer_num]
    wq = jnp.zeros((SUBLANE, P), jnp.float32)
    wq = wq.at[0, :w_out.shape[0]].set(jnp.asarray(w_out, jnp.float32)[:, 0])
    wq = wq.astype(jnp.bfloat16)
    bq = jnp.asarray(b_out, jnp.float32).reshape(1)                            # (1,) f32

    return {
        "w": w_stack,            # (layer_num, P, P) bf16
        "wq": wq,                # (8, P) bf16
        "b": b_stack,            # (layer_num, 1, P) f32
        "bq": bq,                # (1,) f32 (SMEM)
        "pad": P,
        "layer_num": layer_num,
        "in_dim": in_dim,
        "state_dim": state_dim,
        "action_dim": action_dim,
        "activation": activation,
    }


def _choose_tile(B, tile_b):
    """Rows per grid step and padded batch size.

    Default: as few grid steps as possible (per-step overhead ~0.35us); for large
    batches use two lane-aligned (multiple of 128) tiles so a dual-TensorCore chip
    (v7x) can split the parallel batch axis.  Multi-step tiles are multiples of 128
    so the (8, b_pad) output blocks stay lane-dense (unmasked vst).
    """
    b8 = _round_up(max(B, 1), SUBLANE)
    if tile_b is None:
        tile_b = b8 if b8 < 256 else min(1024, _round_up((b8 + 1) // 2, LANE))
    if tile_b >= b8:
        return b8, b8                        # single grid step covering the whole batch
    tb = max(LANE, _round_up(tile_b, LANE))
    if tb >= b8:
        return b8, b8
    return tb, _round_up(b8, tb)


def ddpg_critic_forward(state, action, packed, *, tile_b=None):
    """Batched critic forward.

    state:  (B, state_dim) or (state_dim,)
    action: (B, action_dim) or (action_dim,)
    Returns (B, 1) for batched inputs, (1,) for single 1-D inputs (matching the
    torch module's behaviour on 1-D tensors).
    """
    w_stack, wq, b_stack, bq = packed["w"], packed["wq"], packed["b"], packed["bq"]
    P = packed["pad"]
    layer_num = packed["layer_num"]
    in_dim = packed["in_dim"]
    activation = packed["activation"]

    single = state.ndim == 1
    if single:
        state = state[None, :]
        action = action[None, :]
    B = state.shape[0]

    tb, b_pad = _choose_tile(B, tile_b)
    grid = (b_pad // tb,)

    # Narrow bf16 input: only batch rows are padded; NO 128-lane padding in HBM.
    x = jnp.concatenate(
        [state.astype(jnp.bfloat16), action.astype(jnp.bfloat16)], axis=-1)   # (B, in_dim)
    assert x.shape[1] == in_dim
    if b_pad != B:
        x = jnp.pad(x, ((0, b_pad - B), (0, 0)))

    flops = 2 * b_pad * (in_dim * P + (layer_num - 1) * P * P + SUBLANE * P)
    bytes_accessed = (x.size * 2 + w_stack.size * 2 + wq.size * 2
                      + b_stack.size * 4 + bq.size * 4 + SUBLANE * b_pad * 4)

    out = pl.pallas_call(
        functools.partial(_critic_kernel, layer_num, in_dim, activation),
        out_shape=jax.ShapeDtypeStruct((SUBLANE, b_pad), jnp.float32),
        grid=grid,
        in_specs=[
            pl.BlockSpec((tb, in_dim), lambda i: (i, 0)),            # input tile (narrow)
            pl.BlockSpec((layer_num, P, P), lambda i: (0, 0, 0)),    # hidden weights (resident)
            pl.BlockSpec((SUBLANE, P), lambda i: (0, 0)),            # output weight row (resident)
            pl.BlockSpec((layer_num, 1, P), lambda i: (0, 0, 0)),    # hidden biases (resident)
            pl.BlockSpec(memory_space=pltpu.MemorySpace.SMEM),       # output bias scalar
        ],
        out_specs=pl.BlockSpec((SUBLANE, tb), lambda i: (0, i)),     # lane-dense Q row
        compiler_params=pltpu.CompilerParams(
            dimension_semantics=("parallel",),
        ),
        cost_estimate=pl.CostEstimate(
            flops=flops, transcendentals=0, bytes_accessed=bytes_accessed),
    )(x, w_stack, wq, b_stack, bq)

    q = out[0, :B]               # real Q lives in row 0, first B lanes
    if single:
        return q                 # shape (1,), matches torch module on 1-D inputs
    return q[:, None]            # shape (B, 1)


def ddpg_critic_forward_list(input_list, packed, *, tile_b=None):
    """Module-style entry point: forward(input_list) with [state, action]."""
    if len(input_list) == 2:
        state, action = input_list
    else:
        x = jnp.concatenate(input_list, axis=-1)
        state = x[..., : packed["state_dim"]]
        action = x[..., packed["state_dim"]:]
    return ddpg_critic_forward(state, action, packed, tile_b=tile_b)


def init_params(key, state_shape, action_shape, unit_num, layer_num):
    """Synthetic init mimicking nn.Linear's U(-1/sqrt(fan_in), +) bounds.
    W stored as (in, out) (transpose of torch's weight), b as (out,)."""
    input_shape = sum(state_shape) + sum(action_shape)
    dims = [input_shape] + [unit_num] * layer_num + [1]
    params = []
    for i in range(len(dims) - 1):
        fan_in, fan_out = dims[i], dims[i + 1]
        key, kw, kb = jax.random.split(key, 3)
        bound = 1.0 / jnp.sqrt(jnp.float32(fan_in))
        w = jax.random.uniform(kw, (fan_in, fan_out), jnp.float32, -bound, bound)
        b = jax.random.uniform(kb, (fan_out,), jnp.float32, -bound, bound)
        params.append((w, b))
    return params


def _hp_dot(x, w):
    return jnp.dot(x, w, precision=jax.lax.Precision.HIGHEST)


def reference_forward_kernel_math(state, action, params):
    """Pure-JAX reference mirroring the kernel math: bf16 inputs/weights, f32 rest."""
    x = jnp.concatenate([state, action], axis=-1).astype(jnp.bfloat16).astype(jnp.float32)
    layer_num = len(params) - 1
    for i in range(layer_num):
        w, b = params[i]
        w = w.astype(jnp.bfloat16).astype(jnp.float32)
        x = jnp.maximum(_hp_dot(x, w) + b, 0.0)
    w, b = params[layer_num]
    w = w.astype(jnp.bfloat16).astype(jnp.float32)
    return _hp_dot(x, w) + b


def reference_forward_f32(state, action, params):
    x = jnp.concatenate([state, action], axis=-1).astype(jnp.float32)
    layer_num = len(params) - 1
    for i in range(layer_num):
        w, b = params[i]
        x = jnp.maximum(_hp_dot(x, w) + b, 0.0)
    w, b = params[layer_num]
    return _hp_dot(x, w) + b


if __name__ == "__main__":
    # Config consistent with the module:
    #   agent_index=0, state_shape=[12], action_shape=[4],
    #   unit_num=32, layer_num=2, activation='linear'
    state_shape = [12]
    action_shape = [4]
    unit_num = 32
    layer_num = 2
    batch = 256                      # typical DDPG replay batch (2 parallel tiles)

    key = jax.random.PRNGKey(0)
    key, ks, ka, kp = jax.random.split(key, 4)
    params = init_params(kp, state_shape, action_shape, unit_num, layer_num)
    packed = pack_params(params, sum(state_shape), sum(action_shape), activation="linear")

    states = jax.random.normal(ks, (batch, sum(state_shape)), jnp.float32)
    actions = jax.random.normal(ka, (batch, sum(action_shape)), jnp.float32)

    # Batched forward (default tiling: two 128-row tiles on the parallel batch grid).
    q = ddpg_critic_forward(states, actions, packed)
    q = jax.block_until_ready(q)
    assert q.shape == (batch, 1), q.shape

    ref_km = reference_forward_kernel_math(states, actions, params)
    assert jnp.allclose(q, ref_km, atol=2e-2, rtol=2e-2), (
        float(jnp.max(jnp.abs(q - ref_km))))
    ref_f32 = reference_forward_f32(states, actions, params)
    assert float(jnp.max(jnp.abs(q - ref_f32))) < 0.1   # bf16-weight precision sanity

    # Small odd batch: single grid step, batch padded to a sublane multiple only.
    q_small = ddpg_critic_forward(states[:10], actions[:10], packed)
    q_small = jax.block_until_ready(q_small)
    assert q_small.shape == (10, 1), q_small.shape
    assert jnp.allclose(q_small, ref_km[:10], atol=2e-2, rtol=2e-2)

    # Single-sample path, matching the torch module's 1-D semantics (output shape (1,)).
    q1 = ddpg_critic_forward_list([states[0], actions[0]], packed)
    q1 = jax.block_until_ready(q1)
    assert q1.shape == (1,), q1.shape
    assert jnp.allclose(q1, ref_km[0], atol=2e-2, rtol=2e-2), (q1, ref_km[0])

    print("KERNEL_OK")
</pallas_src>

<mosaic_0001>
module attributes {stable_mosaic.version = 11 : i64} {
  func.func @_critic_kernel(%arg0: i32, %arg1: memref<128x16xbf16, #tpu.memory_space<vmem>>, %arg2: memref<2x128x128xbf16, #tpu.memory_space<vmem>>, %arg3: memref<8x128xbf16, #tpu.memory_space<vmem>>, %arg4: memref<2x1x128xf32, #tpu.memory_space<vmem>>, %arg5: memref<1xf32, #tpu.memory_space<smem>>, %arg6: memref<8x128xf32, #tpu.memory_space<vmem>>) attributes {dimension_semantics = [#tpu.dimension_semantics<parallel>], iteration_bounds = array<i64: 2>, scalar_prefetch = 0 : i64, scratch_operands = 0 : i64, tpu.core_type = #tpu.core_type<tc>, window_params = [{transform_indices = @transform_0, window_bounds = array<i64: 128, 16>}, {pipeline_mode = #tpu.pipeline_mode<synchronous>, transform_indices = @transform_1, window_bounds = array<i64: 2, 128, 128>}, {pipeline_mode = #tpu.pipeline_mode<synchronous>, transform_indices = @transform_2, window_bounds = array<i64: 8, 128>}, {pipeline_mode = #tpu.pipeline_mode<synchronous>, transform_indices = @transform_3, window_bounds = array<i64: 2, 1, 128>}, {transform_indices = @transform_4, window_bounds = array<i64: 1>}, {transform_indices = @transform_5, window_bounds = array<i64: 8, 128>}]} {
    %c0 = arith.constant 0 : index
    %c0_0 = arith.constant 0 : index
    %0 = vector.load %arg1[%c0, %c0_0] : memref<128x16xbf16, #tpu.memory_space<vmem>>, vector<128x16xbf16>
    %1 = arith.extf %0 : vector<128x16xbf16> to vector<128x16xf32>
    %c0_1 = arith.constant 0 : index
    %c0_2 = arith.constant 0 : index
    %c0_3 = arith.constant 0 : index
    %2 = vector.load %arg2[%c0_1, %c0_2, %c0_3] : memref<2x128x128xbf16, #tpu.memory_space<vmem>>, vector<1x16x128xbf16>
    %3 = vector.shape_cast %2 : vector<1x16x128xbf16> to vector<16x128xbf16>
    %4 = arith.extf %3 : vector<16x128xbf16> to vector<16x128xf32>
    %cst = arith.constant dense<0.000000e+00> : vector<128x128xf32>
    %5 = tpu.matmul %1, %4, %cst {dimension_numbers = #tpu.dot_dimension_numbers<[1], [0], [0], [1], [0, 0, 1, 1], [], []>} : vector<128x16xf32>, vector<16x128xf32>, vector<128x128xf32> -> vector<128x128xf32>
    %c0_4 = arith.constant 0 : index
    %c0_5 = arith.constant 0 : index
    %c0_6 = arith.constant 0 : index
    %6 = vector.load %arg4[%c0_4, %c0_5, %c0_6] : memref<2x1x128xf32, #tpu.memory_space<vmem>>, vector<1x1x128xf32>
    %7 = vector.shape_cast %6 : vector<1x1x128xf32> to vector<1x128xf32>
    %8 = vector.broadcast %7 : vector<1x128xf32> to vector<128x128xf32>
    %9 = arith.addf %5, %8 : vector<128x128xf32>
    %cst_7 = arith.constant 0.000000e+00 : f32
    %10 = vector.broadcast %cst_7 : f32 to vector<128x128xf32>
    %11 = arith.maximumf %9, %10 : vector<128x128xf32>
    %c1 = arith.constant 1 : index
    %c0_8 = arith.constant 0 : index
    %c0_9 = arith.constant 0 : index
    %12 = vector.load %arg2[%c1, %c0_8, %c0_9] : memref<2x128x128xbf16, #tpu.memory_space<vmem>>, vector<1x128x128xbf16>
    %13 = vector.shape_cast %12 : vector<1x128x128xbf16> to vector<128x128xbf16>
    %14 = arith.extf %13 : vector<128x128xbf16> to vector<128x128xf32>
    %cst_10 = arith.constant dense<0.000000e+00> : vector<128x128xf32>
    %15 = tpu.matmul %11, %14, %cst_10 {dimension_numbers = #tpu.dot_dimension_numbers<[1], [0], [0], [1], [0, 0, 1, 1], [], []>} : vector<128x128xf32>, vector<128x128xf32>, vector<128x128xf32> -> vector<128x128xf32>
    %c1_11 = arith.constant 1 : index
    %c0_12 = arith.constant 0 : index
    %c0_13 = arith.constant 0 : index
    %16 = vector.load %arg4[%c1_11, %c0_12, %c0_13] : memref<2x1x128xf32, #tpu.memory_space<vmem>>, vector<1x1x128xf32>
    %17 = vector.shape_cast %16 : vector<1x1x128xf32> to vector<1x128xf32>
    %18 = vector.broadcast %17 : vector<1x128xf32> to vector<128x128xf32>
    %19 = arith.addf %15, %18 : vector<128x128xf32>
    %cst_14 = arith.constant 0.000000e+00 : f32
    %20 = vector.broadcast %cst_14 : f32 to vector<128x128xf32>
    %21 = arith.maximumf %19, %20 : vector<128x128xf32>
    %c0_15 = arith.constant 0 : index
    %c0_16 = arith.constant 0 : index
    %22 = vector.load %arg3[%c0_15, %c0_16] : memref<8x128xbf16, #tpu.memory_space<vmem>>, vector<8x128xbf16>
    %23 = arith.extf %22 : vector<8x128xbf16> to vector<8x128xf32>
    %cst_17 = arith.constant dense<0.000000e+00> : vector<8x128xf32>
    %24 = tpu.matmul %23, %21, %cst_17 {dimension_numbers = #tpu.dot_dimension_numbers<[1], [1], [0], [0], [0, 0, 1, 0], [], []>} : vector<8x128xf32>, vector<128x128xf32>, vector<8x128xf32> -> vector<8x128xf32>
    %c0_18 = arith.constant 0 : index
    %25 = memref.load %arg5[%c0_18] : memref<1xf32, #tpu.memory_space<smem>>
    %26 = vector.broadcast %25 : f32 to vector<8x128xf32>
    %27 = arith.addf %24, %26 : vector<8x128xf32>
    %c0_19 = arith.constant 0 : index
    %c0_20 = arith.constant 0 : index
    %28 = vector.load %arg6[%c0_19, %c0_20] : memref<8x128xf32, #tpu.memory_space<vmem>>, vector<8x128xf32>
    tpu.vector_store %arg6[%c0_19, %c0_20], %27 {strides = array<i32>} : memref<8x128xf32, #tpu.memory_space<vmem>>, vector<8x128xf32>,
    return
  }
  func.func @transform_0(%arg0: i32) -> (i32, i32) {
    %c0_i32 = arith.constant 0 : i32
    %c0_i32_0 = arith.constant 0 : i32
    return %arg0, %c0_i32 : i32, i32
  }
  func.func @transform_1(%arg0: i32) -> (i32, i32, i32) {
    %c0_i32 = arith.constant 0 : i32
    %c0_i32_0 = arith.constant 0 : i32
    %c0_i32_1 = arith.constant 0 : i32
    %c0_i32_2 = arith.constant 0 : i32
    return %c0_i32, %c0_i32_0, %c0_i32_1 : i32, i32, i32
  }
  func.func @transform_2(%arg0: i32) -> (i32, i32) {
    %c0_i32 = arith.constant 0 : i32
    %c0_i32_0 = arith.constant 0 : i32
    %c0_i32_1 = arith.constant 0 : i32
    return %c0_i32, %c0_i32_0 : i32, i32
  }
  func.func @transform_3(%arg0: i32) -> (i32, i32, i32) {
    %c0_i32 = arith.constant 0 : i32
    %c0_i32_0 = arith.constant 0 : i32
    %c0_i32_1 = arith.constant 0 : i32
    %c0_i32_2 = arith.constant 0 : i32
    return %c0_i32, %c0_i32_0, %c0_i32_1 : i32, i32, i32
  }
  func.func @transform_4(%arg0: i32) -> i32 {
    %c0_i32 = arith.constant 0 : i32
    %c0_i32_0 = arith.constant 0 : i32
    return %c0_i32 : i32
  }
  func.func @transform_5(%arg0: i32) -> (i32, i32) {
    %c0_i32 = arith.constant 0 : i32
    %c0_i32_0 = arith.constant 0 : i32
    return %c0_i32, %arg0 : i32, i32
  }
}

</mosaic_0001>

<llo_original>
// kernel: tpu_custom_call.1
$region0: #{tpu_custom_call.1}
  #allocation0 [shape = 'u32[]', space=smem, size = 0x4, offset = 0x4, fixed_abs, tag = 'smem constant byte address 0x4 - core index']
  #allocation1 [shape = 'u32[144,128]{1,0:T(1,128)}', space=vmem, size = 0x12000, scoped, tag = 'internal scratch']
  #allocation2 [shape = 'f32[1]{0:T(128)S(6)}', space=smem, size = 0x200, scoped, tag = 'scoped memory for tpu_custom_call.1']
  %s0 = inlined_call_operand.vmem [shape: bf16[256,16], index: 0, kind: input, shape index: {}]
  %s1 = inlined_call_operand.vmem [shape: bf16[2,128,128], index: 1, kind: input, shape index: {}]
  %s2 = inlined_call_operand.vmem [shape: bf16[8,128], index: 2, kind: input, shape index: {}]
  %s3 = inlined_call_operand.vmem [shape: f32[2,1,128], index: 3, kind: input, shape index: {}]
  %s4 = inlined_call_operand.<no memory space> [shape: f32[1], index: 4, kind: input, shape index: {}]
  %s5 = inlined_call_operand.hbm [shape: f32[8,256], index: 5, kind: output, shape index: {}]
  %s6 = sld [smem:[#allocation0]]
  $region53: #{tpu_custom_call.1} parent=0
    _
  %s8 = ssub.s32 1, %s6
  %s9 = scalar_select 0, %s8, %s6
  %10 = sst [smem:[#allocation2]] %s4
  $region1: #{tpu_custom_call.1} parent=0
    #allocation3 [shape = 'u8[8192]{0}', space=vmem, size = 0x2000, scoped, tag = 'output window, operand 0']
    #allocation4 [shape = 's32[2]{0}', space=sflag, size = 0x8, scoped, tag = 'scoped memory for tpu_custom_call.1']
    %11 = vsyncpa [#allocation4], 0
    %s12 = scalar_lea.sflag [#allocation4], 1
    %13 = vsyncpa %s12, 0
    loop: start=0, step=1, limit=4
    $region2: #{tpu_custom_call.1} parent=1 // loop_pre_header
      _
    $region3: #{tpu_custom_call.1} parent=1 // loop_header
      %s15 = sphi 0, %s19
      %p16 = scmp.ge.s32.totalorder %s15, 4
      %s25 = sphi 0, %s27
      %s28 = sphi 0, %s25
      %s29 = sphi 0, %s28
      %s45 = sphi 0, %s29
      %s49 = sphi 0, %s49
      %s51 = sphi 0, %s49
      %s52 = sphi 0, %s51
      %s66 = sphi 0, %s52
      %s70 = sphi 0, %s70
      %s72 = sphi 0, %s70
      %s73 = sphi 0, %s72
      %s87 = sphi 0, %s73
      %s91 = sphi 0, %s91
      %s93 = sphi 0, %s91
      %s94 = sphi 0, %s93
      %s108 = sphi 0, %s94
      %s112 = sphi 0, %s112
      %s114 = sphi 0, %s112
      %s115 = sphi 0, %s114
      %s129 = sphi 0, %s115
      %s135 = sphi 0, %s137
      %s138 = sphi 0, %s135
      %s139 = sphi 0, %s138
      %s155 = sphi 0, %s139
    $region4: #{tpu_custom_call.1} parent=1 // loop_header_branch
      %18 = sbr.rel (%p16) target = $region8
    $region5: #{tpu_custom_call.1} parent=1 // loop_body
      %s20 = ssub.s32 %s15, 1
      %s21 = ssub.s32 %s15, 2
      %s22 = sadd.s32 %s15, 1
      %s23 = ssub.s32 %s15, %s22
      %p24 = scmp.eq.s32.totalorder %s23, 0
      %s26 = sadd.s32 %s25, 1
      %s27 = scalar_select %p24, %s25, %s26
      %p30 = pneg %p24
      %p31 = scmp.eq.s32.totalorder %s15, 1
      %p32 = por %p30, %p31
      %p33 = scmp.ne.s32.totalorder %s25, %s28
      %p34 = scmp.eq.s32.totalorder %s15, 0
      %p35 = por %p33, %p34
      %p36 = scmp.ne.s32.totalorder %s25, %s28
      %p37 = scmp.eq.s32.totalorder %s20, 1
      %p38 = por %p36, %p37
      %p39 = scmp.ne.s32.totalorder %s28, %s29
      %p40 = scmp.eq.s32.totalorder %s20, 0
      %p41 = por %p39, %p40
      %p42 = scmp.ne.s32.totalorder %s28, %s29
      %p43 = scmp.eq.s32.totalorder %s21, 1
      %p44 = por %p42, %p43
      %p46 = scmp.ne.s32.totalorder %s29, %s45
      %p47 = scmp.eq.s32.totalorder %s21, 0
      %p48 = por %p46, %p47
      %s50 = sadd.s32 %s49, 1
      %p53 = scmp.eq.s32.totalorder %s15, 1
      %p54 = scmp.ne.s32.totalorder %s49, %s51
      %p55 = scmp.eq.s32.totalorder %s15, 0
      %p56 = por %p54, %p55
      %p57 = scmp.ne.s32.totalorder %s49, %s51
      %p58 = scmp.eq.s32.totalorder %s20, 1
      %p59 = por %p57, %p58
      %p60 = scmp.ne.s32.totalorder %s51, %s52
      %p61 = scmp.eq.s32.totalorder %s20, 0
      %p62 = por %p60, %p61
      %p63 = scmp.ne.s32.totalorder %s51, %s52
      %p64 = scmp.eq.s32.totalorder %s21, 1
      %p65 = por %p63, %p64
      %p67 = scmp.ne.s32.totalorder %s52, %s66
      %p68 = scmp.eq.s32.totalorder %s21, 0
      %p69 = por %p67, %p68
      %s71 = sadd.s32 %s70, 1
      %p74 = scmp.eq.s32.totalorder %s15, 1
      %p75 = scmp.ne.s32.totalorder %s70, %s72
      %p76 = scmp.eq.s32.totalorder %s15, 0
      %p77 = por %p75, %p76
      %p78 = scmp.ne.s32.totalorder %s70, %s72
      %p79 = scmp.eq.s32.totalorder %s20, 1
      %p80 = por %p78, %p79
      %p81 = scmp.ne.s32.totalorder %s72, %s73
      %p82 = scmp.eq.s32.totalorder %s20, 0
      %p83 = por %p81, %p82
      %p84 = scmp.ne.s32.totalorder %s72, %s73
      %p85 = scmp.eq.s32.totalorder %s21, 1
      %p86 = por %p84, %p85
      %p88 = scmp.ne.s32.totalorder %s73, %s87
      %p89 = scmp.eq.s32.totalorder %s21, 0
      %p90 = por %p88, %p89
      %s92 = sadd.s32 %s91, 1
      %p95 = scmp.eq.s32.totalorder %s15, 1
      %p96 = scmp.ne.s32.totalorder %s91, %s93
      %p97 = scmp.eq.s32.totalorder %s15, 0
      %p98 = por %p96, %p97
      %p99 = scmp.ne.s32.totalorder %s91, %s93
      %p100 = scmp.eq.s32.totalorder %s20, 1
      %p101 = por %p99, %p100
      %p102 = scmp.ne.s32.totalorder %s93, %s94
      %p103 = scmp.eq.s32.totalorder %s20, 0
      %p104 = por %p102, %p103
      %p105 = scmp.ne.s32.totalorder %s93, %s94
      %p106 = scmp.eq.s32.totalorder %s21, 1
      %p107 = por %p105, %p106
      %p109 = scmp.ne.s32.totalorder %s94, %s108
      %p110 = scmp.eq.s32.totalorder %s21, 0
      %p111 = por %p109, %p110
      %s113 = sadd.s32 %s112, 1
      %p116 = scmp.eq.s32.totalorder %s15, 1
      %p117 = scmp.ne.s32.totalorder %s112, %s114
      %p118 = scmp.eq.s32.totalorder %s15, 0
      %p119 = por %p117, %p118
      %p120 = scmp.ne.s32.totalorder %s112, %s114
      %p121 = scmp.eq.s32.totalorder %s20, 1
      %p122 = por %p120, %p121
      %p123 = scmp.ne.s32.totalorder %s114, %s115
      %p124 = scmp.eq.s32.totalorder %s20, 0
      %p125 = por %p123, %p124
      %p126 = scmp.ne.s32.totalorder %s114, %s115
      %p127 = scmp.eq.s32.totalorder %s21, 1
      %p128 = por %p126, %p127
      %p130 = scmp.ne.s32.totalorder %s115, %s129
      %p131 = scmp.eq.s32.totalorder %s21, 0
      %p132 = por %p130, %p131
      %s133 = ssub.s32 %s15, %s22
      %p134 = scmp.eq.s32.totalorder %s133, 0
      %s136 = sadd.s32 %s135, 1
      %s137 = scalar_select %p134, %s135, %s136
      %p140 = pneg %p134
      %p141 = scmp.eq.s32.totalorder %s15, 1
      %p142 = por %p140, %p141
      %p143 = scmp.ne.s32.totalorder %s135, %s138
      %p144 = scmp.eq.s32.totalorder %s15, 0
      %p145 = por %p143, %p144
      %p146 = scmp.ne.s32.totalorder %s135, %s138
      %p147 = scmp.eq.s32.totalorder %s20, 1
      %p148 = por %p146, %p147
      %p149 = scmp.ne.s32.totalorder %s138, %s139
      %p150 = scmp.eq.s32.totalorder %s20, 0
      %p151 = por %p149, %p150
      %p152 = scmp.ne.s32.totalorder %s138, %s139
      %p153 = scmp.eq.s32.totalorder %s21, 1
      %p154 = por %p152, %p153
      %p156 = scmp.ne.s32.totalorder %s139, %s155
      %p157 = scmp.eq.s32.totalorder %s21, 0
      %p158 = por %p156, %p157
      %p159 = scmp.le.s32.totalorder 1, %s15
      %p160 = scmp.lt.s32.totalorder %s15, 3
      %p161 = pnand %p159, %p160
      %p162 = pneg %p161
      // Predicated region
      $region9: #{tpu_custom_call.1} parent=5 // pred_check
        _
      $region10: #{tpu_custom_call.1} parent=5 // pred_check_branch
        %164 = sbr.rel (%p161) target = $region12
      $region11: #{tpu_custom_call.1} parent=5 // pred_region
        %s165 = ssub.s32 %s15, 1
        // Predicated region
        $region13: #{tpu_custom_call.1} parent=11 // pred_check
          %p166 = pneg %p62
        $region14: #{tpu_custom_call.1} parent=11 // pred_check_branch
          %168 = sbr.rel (%p166) target = $region16
        $region15: #{tpu_custom_call.1} parent=11 // pred_region
          _
        $region16: #{tpu_custom_call.1} parent=11 // pred_fallthru
          _
        // Predicated region
        $region17: #{tpu_custom_call.1} parent=11 // pred_check
          %p169 = pneg %p83
        $region18: #{tpu_custom_call.1} parent=11 // pred_check_branch
          %171 = sbr.rel (%p169) target = $region20
        $region19: #{tpu_custom_call.1} parent=11 // pred_region
          _
        $region20: #{tpu_custom_call.1} parent=11 // pred_fallthru
          _
        // Predicated region
        $region21: #{tpu_custom_call.1} parent=11 // pred_check
          %p172 = pneg %p104
        $region22: #{tpu_custom_call.1} parent=11 // pred_check_branch
          %174 = sbr.rel (%p172) target = $region24
        $region23: #{tpu_custom_call.1} parent=11 // pred_region
          _
        $region24: #{tpu_custom_call.1} parent=11 // pred_fallthru
          _
        // Predicated region
        $region25: #{tpu_custom_call.1} parent=11 // pred_check
          %p175 = pneg %p125
        $region26: #{tpu_custom_call.1} parent=11 // pred_check_branch
          %177 = sbr.rel (%p175) target = $region28
        $region27: #{tpu_custom_call.1} parent=11 // pred_region
          _
        $region28: #{tpu_custom_call.1} parent=11 // pred_fallthru
          _
      $region12: #{tpu_custom_call.1} parent=5 // pred_fallthru
        _
      %p178 = scmp.lt.s32.totalorder %s15, 2
      // Predicated region
      $region29: #{tpu_custom_call.1} parent=5 // pred_check
        %p179 = pneg %p178
      $region30: #{tpu_custom_call.1} parent=5 // pred_check_branch
        %181 = sbr.rel (%p179) target = $region32
      $region31: #{tpu_custom_call.1} parent=5 // pred_region
        // Predicated region
        $region33: #{tpu_custom_call.1} parent=31 // pred_check
          %p182 = pneg %p35
        $region34: #{tpu_custom_call.1} parent=31 // pred_check_branch
          %184 = sbr.rel (%p182) target = $region36
        $region35: #{tpu_custom_call.1} parent=31 // pred_region
          %s185 = smul.u32 16, %s15
          %p186 = scmp.lt.s32.totalorder %s185, 31
          %s187 = scalar_select %p186, %s185, 31
          %s188 = smul.addr %s187, 4
          %s189 = scalar_lea.vmem %s0, %s188
          %s190 = smul.u32 16, %s15
        $region36: #{tpu_custom_call.1} parent=31 // pred_fallthru
          _
      $region32: #{tpu_custom_call.1} parent=5 // pred_fallthru
        _
      %p191 = scmp.le.s32.totalorder 1, %s15
      %p192 = scmp.lt.s32.totalorder %s15, 3
      %p193 = pnand %p191, %p192
      %p194 = pneg %p193
      // Predicated region
      $region37: #{tpu_custom_call.1} parent=5 // pred_check
        _
      $region38: #{tpu_custom_call.1} parent=5 // pred_check_branch
        %196 = sbr.rel (%p193) target = $region40
      $region39: #{tpu_custom_call.1} parent=5 // pred_region
        %s197 = ssub.s32 %s15, 1
        %s198 = smul.u32 16, %s20
        %p199 = scmp.lt.s32.totalorder %s198, 31
        %s200 = scalar_select %p199, %s198, 31
        %s201 = smul.addr %s200, 4
        %s202 = scalar_lea.vmem %s0, %s201
        %p203 = pneg %p41
        %p204 = pneg %p38
        %p205 = pneg %p62
        %p206 = pneg %p59
        %p207 = pneg %p83
        %p208 = pneg %p80
        %p209 = pneg %p104
        %p210 = pneg %p101
        %p211 = pneg %p125
        %p212 = pneg %p122
        %p213 = pneg %p151
        %p214 = pneg %p148
        %s215 = sand.u32 %s138, 1
        %s216 = scalar_lea.sflag [#allocation4], %s215
        %s217 = sand.u32 %s138, 1
        %s218 = smul.addr %s217, 8
        %s219 = scalar_lea.vmem [#allocation3], %s218
        %s220 = smul.u32 16, %s20
        %p221 = scmp.lt.s32.totalorder %s220, 31
        %s222 = scalar_select %p221, %s220, 31
        %s223 = smul.addr %s222, 4
        %s224 = scalar_lea.vmem %s0, %s223
        %s225 = smul.u32 16, %s20
        %v226 = vld [vmem:[%s224] sm:$0xf]
        %v227 = vld [vmem:[%s224 + $0x4] sm:$0xf]
        %v228 = vld [vmem:[%s224 + $0x8] sm:$0xf]
        %v229 = vld [vmem:[%s224 + $0xc] sm:$0xf]
        %v230 = vld [vmem:[%s224 + $0x10] sm:$0xf]
        %v231 = vld [vmem:[%s224 + $0x14] sm:$0xf]
        %v232 = vld [vmem:[%s224 + $0x18] sm:$0xf]
        %v233 = vld [vmem:[%s224 + $0x1c] sm:$0xf]
        %v234 = vld [vmem:[%s224 + $0x20] sm:$0xf]
        %v235 = vld [vmem:[%s224 + $0x24] sm:$0xf]
        %v236 = vld [vmem:[%s224 + $0x28] sm:$0xf]
        %v237 = vld [vmem:[%s224 + $0x2c] sm:$0xf]
        %v238 = vld [vmem:[%s224 + $0x30] sm:$0xf]
        %v239 = vld [vmem:[%s224 + $0x34] sm:$0xf]
        %v240 = vld [vmem:[%s224 + $0x38] sm:$0xf]
        %v241 = vld [vmem:[%s224 + $0x3c] sm:$0xf]
        %v242 = vunpack.c.l.bf16 %v226
        %v243 = vunpack.c.l.bf16 %v227
        %v244 = vunpack.c.l.bf16 %v228
        %v245 = vunpack.c.l.bf16 %v229
        %v246 = vunpack.c.l.bf16 %v230
        %v247 = vunpack.c.l.bf16 %v231
        %v248 = vunpack.c.l.bf16 %v232
        %v249 = vunpack.c.l.bf16 %v233
        %v250 = vunpack.c.l.bf16 %v234
        %v251 = vunpack.c.l.bf16 %v235
        %v252 = vunpack.c.l.bf16 %v236
        %v253 = vunpack.c.l.bf16 %v237
        %v254 = vunpack.c.l.bf16 %v238
        %v255 = vunpack.c.l.bf16 %v239
        %v256 = vunpack.c.l.bf16 %v240
        %v257 = vunpack.c.l.bf16 %v241
        %v258 = vld [vmem:[%s1] sm:$0xf]
        %v259 = vld [vmem:[%s1 + $0x4] sm:$0xf]
        %v260 = vunpack.c.l.bf16 %v258
        %v261 = vunpack.c.l.bf16 %v259
        %v262 = vld [vmem:[%s3] sm:$0x1]
        %v264 = vlaneseq
        %v265 = vshrl.u32 %v264, 7
        %v266 = vsub.s32 0, %v265
        %v267 = vrot.slane %v262, %v266
        %vm269 = vcmask 130048
        %v271 = vsel %vm269, %v242, 0
        %v274 = vsel %vm269, %v243, 0
        %v277 = vsel %vm269, %v244, 0
        %v280 = vsel %vm269, %v245, 0
        %v283 = vsel %vm269, %v246, 0
        %v286 = vsel %vm269, %v247, 0
        %v289 = vsel %vm269, %v248, 0
        %v292 = vsel %vm269, %v249, 0
        %v295 = vsel %vm269, %v250, 0
        %v298 = vsel %vm269, %v251, 0
        %v301 = vsel %vm269, %v252, 0
        %v304 = vsel %vm269, %v253, 0
        %v307 = vsel %vm269, %v254, 0
        %v310 = vsel %vm269, %v255, 0
        %v313 = vsel %vm269, %v256, 0
        %v316 = vsel %vm269, %v257, 0
        %318 = vmatprep.subr.mxu0 0.0
        %319 = vmatpush1.msra.mxu0 %v260
        %320 = vmatprep.subr.mxu0 0.0
        %321 = vmatpush1.msra.mxu0 %v261
        %322 = vmatprep.subr.mxu0 0.0
        %323 = vmatpush1.msra.mxu0 0.0
        %324 = vmatprep.subr.mxu0 0.0
        %325 = vmatpush1.msra.mxu0 0.0
        %326 = vmatprep.subr.mxu0 0.0
        %327 = vmatpush1.msra.mxu0 0.0
        %328 = vmatprep.subr.mxu0 0.0
        %329 = vmatpush1.msra.mxu0 0.0
        %330 = vmatprep.subr.mxu0 0.0
        %331 = vmatpush1.msra.mxu0 0.0
        %332 = vmatprep.subr.mxu0 0.0
        %333 = vmatpush1.msra.mxu0 0.0
        %334 = vmatprep.subr.mxu0 0.0
        %335 = vmatpush1.msra.mxu0 0.0
        %336 = vmatprep.subr.mxu0 0.0
        %337 = vmatpush1.msra.mxu0 0.0
        %338 = vmatprep.subr.mxu0 0.0
        %339 = vmatpush1.msra.mxu0 0.0
        %340 = vmatprep.subr.mxu0 0.0
        %341 = vmatpush1.msra.mxu0 0.0
        %342 = vmatprep.subr.mxu0 0.0
        %343 = vmatpush1.msra.mxu0 0.0
        %344 = vmatprep.subr.mxu0 0.0
        %345 = vmatpush1.msra.mxu0 0.0
        %346 = vmatprep.subr.mxu0 0.0
        %347 = vmatpush1.msra.mxu0 0.0
        %348 = vmatprep.subr.mxu0 0.0
        %349 = vmatpush1.msra.mxu0 0.0
        %350 = vmatprep.subr.mxu0 0.0
        %351 = vmatpush1.msra.mxu0 0.0
        %352 = vmatprep.subr.mxu0 0.0
        %353 = vmatpush1.msra.mxu0 0.0
        %354 = vmatprep.subr.mxu0 0.0
        %355 = vmatpush1.msra.mxu0 0.0
        %356 = vmatprep.subr.mxu0 0.0
        %357 = vmatpush1.msra.mxu0 0.0
        %358 = vmatprep.subr.mxu0 0.0
        %359 = vmatpush1.msra.mxu0 0.0
        %360 = vmatprep.subr.mxu0 0.0
        %361 = vmatpush1.msra.mxu0 0.0
        %362 = vmatprep.subr.mxu0 0.0
        %363 = vmatpush1.msra.mxu0 0.0
        %364 = vmatprep.subr.mxu0 0.0
        %365 = vmatpush1.msra.mxu0 0.0
        %366 = vmatprep.subr.mxu0 0.0
        %367 = vmatpush1.msra.mxu0 0.0
        %368 = vmatprep.subr.mxu0 0.0
        %369 = vmatpush1.msra.mxu0 0.0
        %370 = vmatprep.subr.mxu0 0.0
        %371 = vmatpush1.msra.mxu0 0.0
        %372 = vmatprep.subr.mxu0 0.0
        %373 = vmatpush1.msra.mxu0 0.0
        %374 = vmatprep.subr.mxu0 0.0
        %375 = vmatpush1.msra.mxu0 0.0
        %376 = vmatprep.subr.mxu0 0.0
        %377 = vmatpush1.msra.mxu0 0.0
        %378 = vmatprep.subr.mxu0 0.0
        %379 = vmatpush1.msra.mxu0 0.0
        %380 = vmatprep.subr.mxu0 0.0
        %381 = vmatpush1.msra.mxu0 0.0
        %382 = vmatprep.mubr.f32.mxu0 0.0
        %383 = vmatmul.mubr.f32.gmra.mrb[0].mxu0 %v271
        %v384 = vpop.f32.mrb[0].mxu0
        %v385 = vadd.f32 %v267, %v384
        %v386 = vpop.f32.mrb[0].mxu0
        %387 = vmatprep.mubr.f32.mxu0 0.0
        %388 = vmatmul.mubr.f32.gmra.mrb[0].mxu0 %v274
        %v389 = vpop.f32.mrb[0].mxu0
        %v390 = vadd.f32 %v267, %v389
        %v391 = vpop.f32.mrb[0].mxu0
        %392 = vmatprep.mubr.f32.mxu0 0.0
        %393 = vmatmul.mubr.f32.gmra.mrb[0].mxu0 %v277
        %v394 = vpop.f32.mrb[0].mxu0
        %v395 = vadd.f32 %v267, %v394
        %v396 = vpop.f32.mrb[0].mxu0
        %397 = vmatprep.mubr.f32.mxu0 0.0
        %398 = vmatmul.mubr.f32.gmra.mrb[0].mxu0 %v280
        %v399 = vpop.f32.mrb[0].mxu0
        %v400 = vadd.f32 %v267, %v399
        %v401 = vpop.f32.mrb[0].mxu0
        %402 = vmatprep.mubr.f32.mxu0 0.0
        %403 = vmatmul.mubr.f32.gmra.mrb[0].mxu0 %v283
        %v404 = vpop.f32.mrb[0].mxu0
        %v405 = vadd.f32 %v267, %v404
        %v406 = vpop.f32.mrb[0].mxu0
        %407 = vmatprep.mubr.f32.mxu0 0.0
        %408 = vmatmul.mubr.f32.gmra.mrb[0].mxu0 %v286
        %v409 = vpop.f32.mrb[0].mxu0
        %v410 = vadd.f32 %v267, %v409
        %v411 = vpop.f32.mrb[0].mxu0
        %412 = vmatprep.mubr.f32.mxu0 0.0
        %413 = vmatmul.mubr.f32.gmra.mrb[0].mxu0 %v289
        %v414 = vpop.f32.mrb[0].mxu0
        %v415 = vadd.f32 %v267, %v414
        %v416 = vpop.f32.mrb[0].mxu0
        %417 = vmatprep.mubr.f32.mxu0 0.0
        %418 = vmatmul.mubr.f32.gmra.mrb[0].mxu0 %v292
        %v419 = vpop.f32.mrb[0].mxu0
        %v420 = vadd.f32 %v267, %v419
        %v421 = vpop.f32.mrb[0].mxu0
        %422 = vmatprep.mubr.f32.mxu0 0.0
        %423 = vmatmul.mubr.f32.gmra.mrb[0].mxu0 %v295
        %v424 = vpop.f32.mrb[0].mxu0
        %v425 = vadd.f32 %v267, %v424
        %v426 = vpop.f32.mrb[0].mxu0
        %427 = vmatprep.mubr.f32.mxu0 0.0
        %428 = vmatmul.mubr.f32.gmra.mrb[0].mxu0 %v298
        %v429 = vpop.f32.mrb[0].mxu0
        %v430 = vadd.f32 %v267, %v429
        %v431 = vpop.f32.mrb[0].mxu0
        %432 = vmatprep.mubr.f32.mxu0 0.0
        %433 = vmatmul.mubr.f32.gmra.mrb[0].mxu0 %v301
        %v434 = vpop.f32.mrb[0].mxu0
        %v435 = vadd.f32 %v267, %v434
        %v436 = vpop.f32.mrb[0].mxu0
        %437 = vmatprep.mubr.f32.mxu0 0.0
        %438 = vmatmul.mubr.f32.gmra.mrb[0].mxu0 %v304
        %v439 = vpop.f32.mrb[0].mxu0
        %v440 = vadd.f32 %v267, %v439
        %v441 = vpop.f32.mrb[0].mxu0
        %442 = vmatprep.mubr.f32.mxu0 0.0
        %443 = vmatmul.mubr.f32.gmra.mrb[0].mxu0 %v307
        %v444 = vpop.f32.mrb[0].mxu0
        %v445 = vadd.f32 %v267, %v444
        %v446 = vpop.f32.mrb[0].mxu0
        %447 = vmatprep.mubr.f32.mxu0 0.0
        %448 = vmatmul.mubr.f32.gmra.mrb[0].mxu0 %v310
        %v449 = vpop.f32.mrb[0].mxu0
        %v450 = vadd.f32 %v267, %v449
        %v451 = vpop.f32.mrb[0].mxu0
        %452 = vmatprep.mubr.f32.mxu0 0.0
        %453 = vmatmul.mubr.f32.gmra.mrb[0].mxu0 %v313
        %v454 = vpop.f32.mrb[0].mxu0
        %v455 = vadd.f32 %v267, %v454
        %v456 = vpop.f32.mrb[0].mxu0
        %457 = vmatprep.mubr.f32.mxu0 0.0
        %458 = vmatmul.mubr.f32.gmra.mrb[0].mxu0 %v316
        %v459 = vpop.f32.mrb[0].mxu0
        %v460 = vadd.f32 %v267, %v459
        %v461 = vpop.f32.mrb[0].mxu0
        %462 = vdwg.mxu0
        %v463 = vmax.f32 %v385, 0.0
        %v464 = vmax.f32 %v390, 0.0
        %v465 = vmax.f32 %v395, 0.0
        %v466 = vmax.f32 %v400, 0.0
        %v467 = vmax.f32 %v405, 0.0
        %v468 = vmax.f32 %v410, 0.0
        %v469 = vmax.f32 %v415, 0.0
        %v470 = vmax.f32 %v420, 0.0
        %v471 = vmax.f32 %v425, 0.0
        %v472 = vmax.f32 %v430, 0.0
        %v473 = vmax.f32 %v435, 0.0
        %v474 = vmax.f32 %v440, 0.0
        %v475 = vmax.f32 %v445, 0.0
        %v476 = vmax.f32 %v450, 0.0
        %v477 = vmax.f32 %v455, 0.0
        %v478 = vmax.f32 %v460, 0.0
        %s479 = scalar_lea.vmem %s1, 64
        %v480 = vld [vmem:[%s479] sm:$0xf]
        %v481 = vld [vmem:[%s479 + $0x4] sm:$0xf]
        %v482 = vld [vmem:[%s479 + $0x8] sm:$0xf]
        %v483 = vld [vmem:[%s479 + $0xc] sm:$0xf]
        %v484 = vld [vmem:[%s479 + $0x10] sm:$0xf]
        %v485 = vld [vmem:[%s479 + $0x14] sm:$0xf]
        %v486 = vld [vmem:[%s479 + $0x18] sm:$0xf]
        %v487 = vld [vmem:[%s479 + $0x1c] sm:$0xf]
        %v488 = vld [vmem:[%s479 + $0x20] sm:$0xf]
        %v489 = vld [vmem:[%s479 + $0x24] sm:$0xf]
        %v490 = vld [vmem:[%s479 + $0x28] sm:$0xf]
        %v491 = vld [vmem:[%s479 + $0x2c] sm:$0xf]
        %v492 = vld [vmem:[%s479 + $0x30] sm:$0xf]
        %v493 = vld [vmem:[%s479 + $0x34] sm:$0xf]
        %v494 = vld [vmem:[%s479 + $0x38] sm:$0xf]
        %v495 = vld [vmem:[%s479 + $0x3c] sm:$0xf]
        %v496 = vunpack.c.l.bf16 %v480
        %v497 = vunpack.c.l.bf16 %v481
        %v498 = vunpack.c.l.bf16 %v482
        %v499 = vunpack.c.l.bf16 %v483
        %v500 = vunpack.c.l.bf16 %v484
        %v501 = vunpack.c.l.bf16 %v485
        %v502 = vunpack.c.l.bf16 %v486
        %v503 = vunpack.c.l.bf16 %v487
        %v504 = vunpack.c.l.bf16 %v488
        %v505 = vunpack.c.l.bf16 %v489
        %v506 = vunpack.c.l.bf16 %v490
        %v507 = vunpack.c.l.bf16 %v491
        %v508 = vunpack.c.l.bf16 %v492
        %v509 = vunpack.c.l.bf16 %v493
        %v510 = vunpack.c.l.bf16 %v494
        %v511 = vunpack.c.l.bf16 %v495
        %s512 = scalar_lea.vmem %s3, 1
        %v513 = vld [vmem:[%s512] sm:$0x1]
        %v515 = vlaneseq
        %v516 = vshrl.u32 %v515, 7
        %v517 = vsub.s32 0, %v516
        %v518 = vrot.slane %v513, %v517
        %520 = vmatprep.subr.mxu0 0.0
        %521 = vmatpush1.msra.mxu0 %v496
        %522 = vmatprep.subr.mxu0 0.0
        %523 = vmatpush1.msra.mxu0 %v497
        %524 = vmatprep.subr.mxu0 0.0
        %525 = vmatpush1.msra.mxu0 %v498
        %526 = vmatprep.subr.mxu0 0.0
        %527 = vmatpush1.msra.mxu0 %v499
        %528 = vmatprep.subr.mxu0 0.0
        %529 = vmatpush1.msra.mxu0 %v500
        %530 = vmatprep.subr.mxu0 0.0
        %531 = vmatpush1.msra.mxu0 %v501
        %532 = vmatprep.subr.mxu0 0.0
        %533 = vmatpush1.msra.mxu0 %v502
        %534 = vmatprep.subr.mxu0 0.0
        %535 = vmatpush1.msra.mxu0 %v503
        %536 = vmatprep.subr.mxu0 0.0
        %537 = vmatpush1.msra.mxu0 %v504
        %538 = vmatprep.subr.mxu0 0.0
        %539 = vmatpush1.msra.mxu0 %v505
        %540 = vmatprep.subr.mxu0 0.0
        %541 = vmatpush1.msra.mxu0 %v506
        %542 = vmatprep.subr.mxu0 0.0
        %543 = vmatpush1.msra.mxu0 %v507
        %544 = vmatprep.subr.mxu0 0.0
        %545 = vmatpush1.msra.mxu0 %v508
        %546 = vmatprep.subr.mxu0 0.0
        %547 = vmatpush1.msra.mxu0 %v509
        %548 = vmatprep.subr.mxu0 0.0
        %549 = vmatpush1.msra.mxu0 %v510
        %550 = vmatprep.subr.mxu0 0.0
        %551 = vmatpush1.msra.mxu0 %v511
        %552 = vmatprep.subr.mxu0 0.0
        %553 = vmatpush1.msra.mxu0 0.0
        %554 = vmatprep.subr.mxu0 0.0
        %555 = vmatpush1.msra.mxu0 0.0
        %556 = vmatprep.subr.mxu0 0.0
        %557 = vmatpush1.msra.mxu0 0.0
        %558 = vmatprep.subr.mxu0 0.0
        %559 = vmatpush1.msra.mxu0 0.0
        %560 = vmatprep.subr.mxu0 0.0
        %561 = vmatpush1.msra.mxu0 0.0
        %562 = vmatprep.subr.mxu0 0.0
        %563 = vmatpush1.msra.mxu0 0.0
        %564 = vmatprep.subr.mxu0 0.0
        %565 = vmatpush1.msra.mxu0 0.0
        %566 = vmatprep.subr.mxu0 0.0
        %567 = vmatpush1.msra.mxu0 0.0
        %568 = vmatprep.subr.mxu0 0.0
        %569 = vmatpush1.msra.mxu0 0.0
        %570 = vmatprep.subr.mxu0 0.0
        %571 = vmatpush1.msra.mxu0 0.0
        %572 = vmatprep.subr.mxu0 0.0
        %573 = vmatpush1.msra.mxu0 0.0
        %574 = vmatprep.subr.mxu0 0.0
        %575 = vmatpush1.msra.mxu0 0.0
        %576 = vmatprep.subr.mxu0 0.0
        %577 = vmatpush1.msra.mxu0 0.0
        %578 = vmatprep.subr.mxu0 0.0
        %579 = vmatpush1.msra.mxu0 0.0
        %580 = vmatprep.subr.mxu0 0.0
        %581 = vmatpush1.msra.mxu0 0.0
        %582 = vmatprep.subr.mxu0 0.0
        %583 = vmatpush1.msra.mxu0 0.0
        %584 = vmatprep.mubr.f32.mxu0 0.0
        %585 = vmatmul.mubr.f32.gmra.mrb[0].mxu0 %v463
        %v586 = vpop.f32.mrb[0].mxu0
        %v587 = vadd.f32 %v518, %v586
        %v588 = vpop.f32.mrb[0].mxu0
        %589 = vmatprep.mubr.f32.mxu0 0.0
        %590 = vmatmul.mubr.f32.gmra.mrb[0].mxu0 %v464
        %v591 = vpop.f32.mrb[0].mxu0
        %v592 = vadd.f32 %v518, %v591
        %v593 = vpop.f32.mrb[0].mxu0
        %594 = vmatprep.mubr.f32.mxu0 0.0
        %595 = vmatmul.mubr.f32.gmra.mrb[0].mxu0 %v465
        %v596 = vpop.f32.mrb[0].mxu0
        %v597 = vadd.f32 %v518, %v596
        %v598 = vpop.f32.mrb[0].mxu0
        %599 = vmatprep.mubr.f32.mxu0 0.0
        %600 = vmatmul.mubr.f32.gmra.mrb[0].mxu0 %v466
        %v601 = vpop.f32.mrb[0].mxu0
        %v602 = vadd.f32 %v518, %v601
        %v603 = vpop.f32.mrb[0].mxu0
        %604 = vmatprep.mubr.f32.mxu0 0.0
        %605 = vmatmul.mubr.f32.gmra.mrb[0].mxu0 %v467
        %v606 = vpop.f32.mrb[0].mxu0
        %v607 = vadd.f32 %v518, %v606
        %v608 = vpop.f32.mrb[0].mxu0
        %609 = vmatprep.mubr.f32.mxu0 0.0
        %610 = vmatmul.mubr.f32.gmra.mrb[0].mxu0 %v468
        %v611 = vpop.f32.mrb[0].mxu0
        %v612 = vadd.f32 %v518, %v611
        %v613 = vpop.f32.mrb[0].mxu0
        %614 = vmatprep.mubr.f32.mxu0 0.0
        %615 = vmatmul.mubr.f32.gmra.mrb[0].mxu0 %v469
        %v616 = vpop.f32.mrb[0].mxu0
        %v617 = vadd.f32 %v518, %v616
        %v618 = vpop.f32.mrb[0].mxu0
        %619 = vmatprep.mubr.f32.mxu0 0.0
        %620 = vmatmul.mubr.f32.gmra.mrb[0].mxu0 %v470
        %v621 = vpop.f32.mrb[0].mxu0
        %v622 = vadd.f32 %v518, %v621
        %v623 = vpop.f32.mrb[0].mxu0
        %624 = vmatprep.mubr.f32.mxu0 0.0
        %625 = vmatmul.mubr.f32.gmra.mrb[0].mxu0 %v471
        %v626 = vpop.f32.mrb[0].mxu0
        %v627 = vadd.f32 %v518, %v626
        %v628 = vpop.f32.mrb[0].mxu0
        %629 = vmatprep.mubr.f32.mxu0 0.0
        %630 = vmatmul.mubr.f32.gmra.mrb[0].mxu0 %v472
        %v631 = vpop.f32.mrb[0].mxu0
        %v632 = vadd.f32 %v518, %v631
        %v633 = vpop.f32.mrb[0].mxu0
        %634 = vmatprep.mubr.f32.mxu0 0.0
        %635 = vmatmul.mubr.f32.gmra.mrb[0].mxu0 %v473
        %v636 = vpop.f32.mrb[0].mxu0
        %v637 = vadd.f32 %v518, %v636
        %v638 = vpop.f32.mrb[0].mxu0
        %639 = vmatprep.mubr.f32.mxu0 0.0
        %640 = vmatmul.mubr.f32.gmra.mrb[0].mxu0 %v474
        %v641 = vpop.f32.mrb[0].mxu0
        %v642 = vadd.f32 %v518, %v641
        %v643 = vpop.f32.mrb[0].mxu0
        %644 = vmatprep.mubr.f32.mxu0 0.0
        %645 = vmatmul.mubr.f32.gmra.mrb[0].mxu0 %v475
        %v646 = vpop.f32.mrb[0].mxu0
        %v647 = vadd.f32 %v518, %v646
        %v648 = vpop.f32.mrb[0].mxu0
        %649 = vmatprep.mubr.f32.mxu0 0.0
        %650 = vmatmul.mubr.f32.gmra.mrb[0].mxu0 %v476
        %v651 = vpop.f32.mrb[0].mxu0
        %v652 = vadd.f32 %v518, %v651
        %v653 = vpop.f32.mrb[0].mxu0
        %654 = vmatprep.mubr.f32.mxu0 0.0
        %655 = vmatmul.mubr.f32.gmra.mrb[0].mxu0 %v477
        %v656 = vpop.f32.mrb[0].mxu0
        %v657 = vadd.f32 %v518, %v656
        %v658 = vpop.f32.mrb[0].mxu0
        %659 = vmatprep.mubr.f32.mxu0 0.0
        %660 = vmatmul.mubr.f32.gmra.mrb[0].mxu0 %v478
        %v661 = vpop.f32.mrb[0].mxu0
        %v662 = vadd.f32 %v518, %v661
        %v663 = vpop.f32.mrb[0].mxu0
        %664 = vdwg.mxu0
        %v665 = vmax.f32 %v587, 0.0
        %v666 = vmax.f32 %v592, 0.0
        %v667 = vmax.f32 %v597, 0.0
        %v668 = vmax.f32 %v602, 0.0
        %v669 = vmax.f32 %v607, 0.0
        %v670 = vmax.f32 %v612, 0.0
        %v671 = vmax.f32 %v617, 0.0
        %v672 = vmax.f32 %v622, 0.0
        %v673 = vmax.f32 %v627, 0.0
        %v674 = vmax.f32 %v632, 0.0
        %v675 = vmax.f32 %v637, 0.0
        %v676 = vmax.f32 %v642, 0.0
        %v677 = vmax.f32 %v647, 0.0
        %v678 = vmax.f32 %v652, 0.0
        %v679 = vmax.f32 %v657, 0.0
        %v680 = vmax.f32 %v662, 0.0
        %v681 = vld [vmem:[%s2] sm:$0xf]
        %v682 = vunpack.c.l.bf16 %v681
        %s683 = sld [smem:[#allocation2]]
        %v684 = vstv %s683
        %685 = vmatprep.subr.mxu0 0.0
        %686 = vmatpush1.xpose.msra.mxu0 %v665
        %687 = vmatprep.subr.mxu0 0.0
        %688 = vmatpush1.xpose.msra.mxu0 %v666
        %689 = vmatprep.subr.mxu0 0.0
        %690 = vmatpush1.xpose.msra.mxu0 %v667
        %691 = vmatprep.subr.mxu0 0.0
        %692 = vmatpush1.xpose.msra.mxu0 %v668
        %693 = vmatprep.subr.mxu0 0.0
        %694 = vmatpush1.xpose.msra.mxu0 %v669
        %695 = vmatprep.subr.mxu0 0.0
        %696 = vmatpush1.xpose.msra.mxu0 %v670
        %697 = vmatprep.subr.mxu0 0.0
        %698 = vmatpush1.xpose.msra.mxu0 %v671
        %699 = vmatprep.subr.mxu0 0.0
        %700 = vmatpush1.xpose.msra.mxu0 %v672
        %701 = vmatprep.subr.mxu0 0.0
        %702 = vmatpush1.xpose.msra.mxu0 %v673
        %703 = vmatprep.subr.mxu0 0.0
        %704 = vmatpush1.xpose.msra.mxu0 %v674
        %705 = vmatprep.subr.mxu0 0.0
        %706 = vmatpush1.xpose.msra.mxu0 %v675
        %707 = vmatprep.subr.mxu0 0.0
        %708 = vmatpush1.xpose.msra.mxu0 %v676
        %709 = vmatprep.subr.mxu0 0.0
        %710 = vmatpush1.xpose.msra.mxu0 %v677
        %711 = vmatprep.subr.mxu0 0.0
        %712 = vmatpush1.xpose.msra.mxu0 %v678
        %713 = vmatprep.subr.mxu0 0.0
        %714 = vmatpush1.xpose.msra.mxu0 %v679
        %715 = vmatprep.subr.mxu0 0.0
        %716 = vmatpush1.xpose.msra.mxu0 %v680
        %717 = vmatprep.subr.mxu0 0.0
        %718 = vmatpush1.xpose.msra.mxu0 0.0
        %719 = vmatprep.subr.mxu0 0.0
        %720 = vmatpush1.xpose.msra.mxu0 0.0
        %721 = vmatprep.subr.mxu0 0.0
        %722 = vmatpush1.xpose.msra.mxu0 0.0
        %723 = vmatprep.subr.mxu0 0.0
        %724 = vmatpush1.xpose.msra.mxu0 0.0
        %725 = vmatprep.subr.mxu0 0.0
        %726 = vmatpush1.xpose.msra.mxu0 0.0
        %727 = vmatprep.subr.mxu0 0.0
        %728 = vmatpush1.xpose.msra.mxu0 0.0
        %729 = vmatprep.subr.mxu0 0.0
        %730 = vmatpush1.xpose.msra.mxu0 0.0
        %731 = vmatprep.subr.mxu0 0.0
        %732 = vmatpush1.xpose.msra.mxu0 0.0
        %733 = vmatprep.subr.mxu0 0.0
        %734 = vmatpush1.xpose.msra.mxu0 0.0
        %735 = vmatprep.subr.mxu0 0.0
        %736 = vmatpush1.xpose.msra.mxu0 0.0
        %737 = vmatprep.subr.mxu0 0.0
        %738 = vmatpush1.xpose.msra.mxu0 0.0
        %739 = vmatprep.subr.mxu0 0.0
        %740 = vmatpush1.xpose.msra.mxu0 0.0
        %741 = vmatprep.subr.mxu0 0.0
        %742 = vmatpush1.xpose.msra.mxu0 0.0
        %743 = vmatprep.subr.mxu0 0.0
        %744 = vmatpush1.xpose.msra.mxu0 0.0
        %745 = vmatprep.subr.mxu0 0.0
        %746 = vmatpush1.xpose.msra.mxu0 0.0
        %747 = vmatprep.subr.mxu0 0.0
        %748 = vmatpush1.xpose.msra.mxu0 0.0
        %749 = vmatprep.mubr.f32.mxu0 0.0
        %750 = vmatmul.mubr.f32.gmra.mrb[0].mxu0 %v682
        %v751 = vpop.f32.mrb[0].mxu0
        %v752 = vadd.f32 %v684, %v751
        %v753 = vpop.f32.mrb[0].mxu0
        %754 = vdwg.mxu0
        %755 = vst [vmem:[%s219] sm:$0xff] %v752
        %s756 = sand.u32 %s138, 1
        %s757 = scalar_lea.sflag [#allocation4], %s756
        %s758 = sand.u32 %s138, 1
        %s759 = smul.addr %s758, 8
        %s760 = scalar_lea.vmem [#allocation3], %s759
        // Predicated region
        $region41: #{tpu_custom_call.1} parent=39 // pred_check
          %p761 = pneg %p148
        $region42: #{tpu_custom_call.1} parent=39 // pred_check_branch
          %763 = sbr.rel (%p761) target = $region44
        $region43: #{tpu_custom_call.1} parent=39 // pred_region
          %s765 = ssub.s32 128, 128
          %766 = vsyncadd %s757, %s765
          %s767 = smul.addr %s20, 128
          %s768 = scalar_lea.hbm %s5, %s767
          %s770 = sshll.u32 %s760, 4
          %s771 = int_to_ptr.vmem [resolvable:$true] %s770
          %773 = dma.vmem_to_hbm [thread:$0]  %s771, 128, %s768, %s757
        $region44: #{tpu_custom_call.1} parent=39 // pred_fallthru
          _
      $region40: #{tpu_custom_call.1} parent=5 // pred_fallthru
        _
      %p774 = scmp.le.s32.totalorder 2, %s15
      // Predicated region
      $region45: #{tpu_custom_call.1} parent=5 // pred_check
        %p775 = pneg %p774
      $region46: #{tpu_custom_call.1} parent=5 // pred_check_branch
        %777 = sbr.rel (%p775) target = $region48
      $region47: #{tpu_custom_call.1} parent=5 // pred_region
        %s778 = ssub.s32 %s15, 2
        // Predicated region
        $region49: #{tpu_custom_call.1} parent=47 // pred_check
          %p779 = pneg %p154
        $region50: #{tpu_custom_call.1} parent=47 // pred_check_branch
          %781 = sbr.rel (%p779) target = $region52
        $region51: #{tpu_custom_call.1} parent=47 // pred_region
          %s782 = sand.u32 %s139, 1
          %s783 = scalar_lea.sflag [#allocation4], %s782
          %s784 = sand.u32 %s139, 1
          %s785 = smul.addr %s784, 8
          %s786 = scalar_lea.vmem [#allocation3], %s785
          %787 = dma.done %s783, 128
        $region52: #{tpu_custom_call.1} parent=47 // pred_fallthru
          _
      $region48: #{tpu_custom_call.1} parent=5 // pred_fallthru
        _
    $region6: #{tpu_custom_call.1} parent=1 // loop_footer
      %s19 = sadd.s32 1, %s15
    $region7: #{tpu_custom_call.1} parent=1 // loop_footer_branch
      %14 = sbr.rel target = $region3
    $region8: #{tpu_custom_call.1} parent=1 // loop_exit
      _
    %788 = vsyncpa [#allocation4], 1
    %s789 = scalar_lea.sflag [#allocation4], 1
    %790 = vsyncpa %s789, 1

</llo_original>
